<compile_context>
chip_gen: v6e
topology: v6e:2x2x1
jax: 0.10.0
libtpu: 0.0.40
codegen_flags: <defaults>
</compile_context>

<pallas_src>
import jax
import jax.numpy as jnp
from jax.experimental import pallas as pl
from jax.experimental.pallas import tpu as pltpu


def _round_up(x, m):
    return (x + m - 1) // m * m


def _vmem_limit_bytes():
    cap = 128 * 1024 * 1024
    try:
        cap = int(getattr(pltpu.get_tpu_info(), "vmem_capacity_bytes", cap))
    except Exception:
        pass
    # ~96-100 MiB on v5e/v6e (128 MiB physical), ~48 MiB on v7x (64 MiB physical).
    return int(min(cap * 3 // 4, 100 * 1024 * 1024))


# ---------------------------------------------------------------------------
# Pallas kernel: tiled layer-1 matmul + fused layers 2-4 epilogue
# ---------------------------------------------------------------------------
def _mlp_kernel(x_ref, w1_ref, b1_ref, w2_ref, b2_ref, w3_ref, b3_ref,
                w4_ref, b4_ref, o_ref, acc_ref):
    k = pl.program_id(1)

    @pl.when(k == 0)
    def _():
        acc_ref[...] = jnp.zeros_like(acc_ref)

    # Layer-1 partial product for this K slab (bf16 x bf16 -> f32 on the MXU).
    acc_ref[...] += jnp.dot(x_ref[...], w1_ref[...],
                            preferred_element_type=jnp.float32)

    @pl.when(k == pl.num_programs(1) - 1)
    def _():
        def lrelu(h):
            return jnp.maximum(h, 0.2 * h)

        h1 = lrelu(acc_ref[...] + b1_ref[...])
        h2 = lrelu(jnp.dot(h1.astype(jnp.bfloat16), w2_ref[...],
                           preferred_element_type=jnp.float32) + b2_ref[...])
        h3 = lrelu(jnp.dot(h2.astype(jnp.bfloat16), w3_ref[...],
                           preferred_element_type=jnp.float32) + b3_ref[...])
        # Final layer (out_features == 1): VPU multiply + lane reduce instead of a
        # lane-sparse N=1 MXU matmul.
        o = jnp.sum(h3 * w4_ref[...].astype(jnp.float32), axis=-1, keepdims=True)
        o = o + b4_ref[...]
        # Broadcast across 128 lanes -> lane-dense store; wrapper slices column 0.
        o_ref[...] = jnp.broadcast_to(o, o_ref.shape)


def discriminator_mlp_forward(x_flat, params, *, tk=512):
    """x_flat: (B, D_in) float32.  params: [(W1ᵀ,b1),(W2ᵀ,b2),(W3ᵀ,b3),(w4_row,b4)]."""
    (w1, b1), (w2, b2), (w3, b3), (w4_row, b4) = params
    B, d_in = x_flat.shape
    n1, n2, n3 = w1.shape[1], w2.shape[1], w3.shape[1]

    # --- tile sizes --------------------------------------------------------
    # M: pad batch to a sublane/MXU-friendly tile (>=16 rows for bf16 inputs).
    tm = 256 if B >= 256 else _round_up(B, 16)
    m_pad = _round_up(B, tm)
    # K: prefer 512 (2x the v6e/v7x MXU edge); fall back to 256-multiples so odd
    # input sizes do not get over-padded.
    if d_in % tk != 0:
        tk = 256
    tk = min(tk, _round_up(d_in, 256))
    k_pad = _round_up(d_in, tk)

    # --- pad operands (zero padding contributes nothing to the matmul) ------
    x_p = jnp.zeros((m_pad, k_pad), jnp.bfloat16).at[:B, :d_in].set(
        x_flat.astype(jnp.bfloat16))
    w1_p = jnp.zeros((k_pad, n1), jnp.bfloat16).at[:d_in, :].set(w1)

    grid = (m_pad // tm, k_pad // tk)

    flops = 2 * m_pad * (k_pad * n1 + n1 * n2 + n2 * n3 + n3)
    bytes_accessed = (
        (x_p.size + w1_p.size + w2.size + w3.size + w4_row.size) * 2
        + (b1.size + b2.size + b3.size + b4.size) * 4
        + m_pad * 128 * 4)

    out = pl.pallas_call(
        _mlp_kernel,
        out_shape=jax.ShapeDtypeStruct((m_pad, 128), jnp.float32),
        grid_spec=pltpu.PrefetchScalarGridSpec(
            num_scalar_prefetch=0,
            grid=grid,
            in_specs=[
                pl.BlockSpec((tm, tk), lambda i, k: (i, k)),    # x (M,K tiles)
                pl.BlockSpec((tk, n1), lambda i, k: (k, 0)),    # W1 (streamed over K)
                pl.BlockSpec((1, n1), lambda i, k: (0, 0)),     # b1
                pl.BlockSpec((n1, n2), lambda i, k: (0, 0)),    # W2 (resident)
                pl.BlockSpec((1, n2), lambda i, k: (0, 0)),     # b2
                pl.BlockSpec((n2, n3), lambda i, k: (0, 0)),    # W3 (resident)
                pl.BlockSpec((1, n3), lambda i, k: (0, 0)),     # b3
                pl.BlockSpec((1, n3), lambda i, k: (0, 0)),     # w4 row
                pl.BlockSpec((1, 1), lambda i, k: (0, 0)),      # b4
            ],
            out_specs=pl.BlockSpec((tm, 128), lambda i, k: (i, 0)),
            scratch_shapes=[pltpu.VMEM((tm, n1), jnp.float32)],
        ),
        compiler_params=pltpu.CompilerParams(
            dimension_semantics=("parallel", "arbitrary"),
            vmem_limit_bytes=_vmem_limit_bytes(),
        ),
        cost_estimate=pl.CostEstimate(
            flops=flops, transcendentals=0, bytes_accessed=bytes_accessed),
    )(x_p, w1_p, b1, w2, b2, w3, b3, w4_row, b4)

    return out[:B, 0]


# ---------------------------------------------------------------------------
# Parameter setup (plain-JAX glue): deterministic init + spectral normalization
# ---------------------------------------------------------------------------
def _l2norm(v, eps=1e-12):
    return v / (jnp.linalg.norm(v) + eps)


def _spectral_norm(w, key, power_iterations=1):
    # TODO(synk): PyTorch's SpectralNorm persists `u` across steps; here we draw a
    # fresh u and run one power iteration, so sigma differs from a trained checkpoint.
    out_f, _ = w.shape
    u = _l2norm(jax.random.normal(key, (out_f,), dtype=jnp.float32))
    v = None
    for _ in range(power_iterations):
        v = _l2norm(w.T @ u)
        u = _l2norm(w @ v)
    sigma = u @ (w @ v)
    return w / sigma


def _linear_init(key, out_f, in_f):
    """PyTorch nn.Linear default init: U(-1/sqrt(in), 1/sqrt(in)) for W and b."""
    kw, kb = jax.random.split(key)
    bound = 1.0 / jnp.sqrt(jnp.float32(in_f))
    w = jax.random.uniform(kw, (out_f, in_f), jnp.float32, -bound, bound)
    b = jax.random.uniform(kb, (out_f,), jnp.float32, -bound, bound)
    return w, b


def make_params(key, image_size, mlp_dim, rgb_channel):
    d_in = image_size * image_size * rgb_channel
    dims = [(mlp_dim * 48, d_in),
            (mlp_dim * 12, mlp_dim * 48),
            (mlp_dim * 4, mlp_dim * 12),
            (1, mlp_dim * 4)]
    spectral = [True, True, True, False]

    params = []
    for li, ((out_f, in_f), sn) in enumerate(zip(dims, spectral)):
        key, k_init, k_u = jax.random.split(key, 3)
        w, b = _linear_init(k_init, out_f, in_f)
        if sn:
            w = _spectral_norm(w, k_u)
        b2d = jnp.asarray(b.reshape(1, out_f), jnp.float32)
        if li < 3:
            # store transposed (in, out) in bf16: MXU-native, half the HBM bytes
            params.append((jnp.asarray(w.T, jnp.bfloat16), b2d))
        else:
            # final layer (out_features == 1): keep as a (1, in) row for the VPU reduce
            params.append((jnp.asarray(w, jnp.bfloat16), b2d))
    return params


# ---------------------------------------------------------------------------
# Module-equivalent wrapper + pure-JAX reference
# ---------------------------------------------------------------------------
def discriminator_mlp(x_nchw, params):
    B = x_nchw.shape[0]
    x_flat = x_nchw.reshape(B, -1)                   # == input.view(B, -1) (NCHW row-major)
    out = discriminator_mlp_forward(x_flat, params)  # (B,)
    return out, None, None                           # matches (x.squeeze(), None, None)


def _reference(x_flat, params):
    (w1, b1), (w2, b2), (w3, b3), (w4_row, b4) = params

    def lrelu(h):
        return jnp.maximum(h, 0.2 * h)

    x = x_flat.astype(jnp.bfloat16)
    h = lrelu(jnp.dot(x, w1, preferred_element_type=jnp.float32) + b1)
    h = lrelu(jnp.dot(h.astype(jnp.bfloat16), w2, preferred_element_type=jnp.float32) + b2)
    h = lrelu(jnp.dot(h.astype(jnp.bfloat16), w3, preferred_element_type=jnp.float32) + b3)
    return jnp.sum(h * w4_row.astype(jnp.float32), axis=-1) + b4[0, 0]


if __name__ == "__main__":
    # Small, module-consistent shapes: batch=2, rgb_channel=3, image_size=16, mlp_dim=8
    batch, image_size, mlp_dim, rgb_channel = 2, 16, 8, 3

    key = jax.random.PRNGKey(0)
    k_x, k_p = jax.random.split(key)
    x = jax.random.normal(k_x, (batch, rgb_channel, image_size, image_size),
                          dtype=jnp.float32)
    params = make_params(k_p, image_size, mlp_dim, rgb_channel)

    out, _, _ = discriminator_mlp(x, params)
    out = jax.block_until_ready(out)
    assert out.shape == (batch,), out.shape

    ref = _reference(x.reshape(batch, -1), params)
    assert jnp.allclose(out, ref, rtol=5e-2, atol=5e-2), (out, ref)

    print("KERNEL_OK")
</pallas_src>

<mosaic_0001>
module attributes {stable_mosaic.version = 11 : i64} {
  func.func @_mlp_kernel(%arg0: i32, %arg1: i32, %arg2: memref<16x256xbf16, #tpu.memory_space<vmem>>, %arg3: memref<256x384xbf16, #tpu.memory_space<vmem>>, %arg4: memref<1x384xf32, #tpu.memory_space<vmem>>, %arg5: memref<384x96xbf16, #tpu.memory_space<vmem>>, %arg6: memref<1x96xf32, #tpu.memory_space<vmem>>, %arg7: memref<96x32xbf16, #tpu.memory_space<vmem>>, %arg8: memref<1x32xf32, #tpu.memory_space<vmem>>, %arg9: memref<1x32xbf16, #tpu.memory_space<vmem>>, %arg10: memref<1x1xf32, #tpu.memory_space<vmem>>, %arg11: memref<16x128xf32, #tpu.memory_space<vmem>>, %arg12: memref<16x384xf32, #tpu.memory_space<vmem>>) attributes {dimension_semantics = [#tpu.dimension_semantics<parallel>, #tpu.dimension_semantics<arbitrary>], iteration_bounds = array<i64: 1, 3>, scalar_prefetch = 0 : i64, scratch_operands = 1 : i64, tpu.core_type = #tpu.core_type<tc>, window_params = [{transform_indices = @transform_0, window_bounds = array<i64: 16, 256>}, {transform_indices = @transform_1, window_bounds = array<i64: 256, 384>}, {pipeline_mode = #tpu.pipeline_mode<synchronous>, transform_indices = @transform_2, window_bounds = array<i64: 1, 384>}, {pipeline_mode = #tpu.pipeline_mode<synchronous>, transform_indices = @transform_3, window_bounds = array<i64: 384, 96>}, {pipeline_mode = #tpu.pipeline_mode<synchronous>, transform_indices = @transform_4, window_bounds = array<i64: 1, 96>}, {pipeline_mode = #tpu.pipeline_mode<synchronous>, transform_indices = @transform_5, window_bounds = array<i64: 96, 32>}, {pipeline_mode = #tpu.pipeline_mode<synchronous>, transform_indices = @transform_6, window_bounds = array<i64: 1, 32>}, {pipeline_mode = #tpu.pipeline_mode<synchronous>, transform_indices = @transform_7, window_bounds = array<i64: 1, 32>}, {pipeline_mode = #tpu.pipeline_mode<synchronous>, transform_indices = @transform_8, window_bounds = array<i64: 1, 1>}, {transform_indices = @transform_9, window_bounds = array<i64: 16, 128>}]} {
    %c0_i32 = arith.constant 0 : i32
    %0 = arith.cmpi eq, %arg1, %c0_i32 : i32
    %1 = arith.extui %0 : i1 to i32
    %c0_i32_0 = arith.constant 0 : i32
    %2 = arith.cmpi ne, %1, %c0_i32_0 : i32
    scf.if %2 {
      %cst_9 = arith.constant 0.000000e+00 : f32
      %12 = vector.broadcast %cst_9 : f32 to vector<16x384xf32>
      %c0_10 = arith.constant 0 : index
      %c0_11 = arith.constant 0 : index
      %13 = vector.load %arg12[%c0_10, %c0_11] : memref<16x384xf32, #tpu.memory_space<vmem>>, vector<16x384xf32>
      tpu.vector_store %arg12[%c0_10, %c0_11], %12 {strides = array<i32>} : memref<16x384xf32, #tpu.memory_space<vmem>>, vector<16x384xf32>,
    } else {
    }
    %c0 = arith.constant 0 : index
    %c0_1 = arith.constant 0 : index
    %3 = vector.load %arg12[%c0, %c0_1] : memref<16x384xf32, #tpu.memory_space<vmem>>, vector<16x384xf32>
    %c0_2 = arith.constant 0 : index
    %c0_3 = arith.constant 0 : index
    %4 = vector.load %arg2[%c0_2, %c0_3] : memref<16x256xbf16, #tpu.memory_space<vmem>>, vector<16x256xbf16>
    %c0_4 = arith.constant 0 : index
    %c0_5 = arith.constant 0 : index
    %5 = vector.load %arg3[%c0_4, %c0_5] : memref<256x384xbf16, #tpu.memory_space<vmem>>, vector<256x384xbf16>
    %cst = arith.constant dense<0.000000e+00> : vector<16x384xf32>
    %6 = tpu.matmul %4, %5, %cst {dimension_numbers = #tpu.dot_dimension_numbers<[1], [0], [0], [1], [0, 0, 1, 1], [], []>} : vector<16x256xbf16>, vector<256x384xbf16>, vector<16x384xf32> -> vector<16x384xf32>
    %7 = arith.addf %3, %6 : vector<16x384xf32>
    %c0_6 = arith.constant 0 : index
    %c0_7 = arith.constant 0 : index
    %8 = vector.load %arg12[%c0_6, %c0_7] : memref<16x384xf32, #tpu.memory_space<vmem>>, vector<16x384xf32>
    tpu.vector_store %arg12[%c0_6, %c0_7], %7 {strides = array<i32>} : memref<16x384xf32, #tpu.memory_space<vmem>>, vector<16x384xf32>,
    %c2_i32 = arith.constant 2 : i32
    %9 = arith.cmpi eq, %arg1, %c2_i32 : i32
    %10 = arith.extui %9 : i1 to i32
    %c0_i32_8 = arith.constant 0 : i32
    %11 = arith.cmpi ne, %10, %c0_i32_8 : i32
    scf.if %11 {
      %c0_9 = arith.constant 0 : index
      %c0_10 = arith.constant 0 : index
      %12 = vector.load %arg12[%c0_9, %c0_10] : memref<16x384xf32, #tpu.memory_space<vmem>>, vector<16x384xf32>
      %c0_11 = arith.constant 0 : index
      %c0_12 = arith.constant 0 : index
      %13 = vector.load %arg4[%c0_11, %c0_12] : memref<1x384xf32, #tpu.memory_space<vmem>>, vector<1x384xf32>
      %14 = vector.broadcast %13 : vector<1x384xf32> to vector<16x384xf32>
      %15 = arith.addf %12, %14 : vector<16x384xf32>
      %cst_13 = arith.constant 2.000000e-01 : f32
      %16 = vector.broadcast %cst_13 : f32 to vector<16x384xf32>
      %17 = arith.mulf %16, %15 : vector<16x384xf32>
      %18 = arith.maximumf %15, %17 : vector<16x384xf32>
      %19 = arith.truncf %18 : vector<16x384xf32> to vector<16x384xbf16>
      %c0_14 = arith.constant 0 : index
      %c0_15 = arith.constant 0 : index
      %20 = vector.load %arg5[%c0_14, %c0_15] : memref<384x96xbf16, #tpu.memory_space<vmem>>, vector<384x96xbf16>
      %cst_16 = arith.constant dense<0.000000e+00> : vector<16x96xf32>
      %21 = tpu.matmul %19, %20, %cst_16 {dimension_numbers = #tpu.dot_dimension_numbers<[1], [0], [0], [1], [0, 0, 1, 1], [], []>} : vector<16x384xbf16>, vector<384x96xbf16>, vector<16x96xf32> -> vector<16x96xf32>
      %c0_17 = arith.constant 0 : index
      %c0_18 = arith.constant 0 : index
      %22 = vector.load %arg6[%c0_17, %c0_18] : memref<1x96xf32, #tpu.memory_space<vmem>>, vector<1x96xf32>
      %23 = vector.broadcast %22 : vector<1x96xf32> to vector<16x96xf32>
      %24 = arith.addf %21, %23 : vector<16x96xf32>
      %cst_19 = arith.constant 2.000000e-01 : f32
      %25 = vector.broadcast %cst_19 : f32 to vector<16x96xf32>
      %26 = arith.mulf %25, %24 : vector<16x96xf32>
      %27 = arith.maximumf %24, %26 : vector<16x96xf32>
      %28 = arith.truncf %27 : vector<16x96xf32> to vector<16x96xbf16>
      %c0_20 = arith.constant 0 : index
      %c0_21 = arith.constant 0 : index
      %29 = vector.load %arg7[%c0_20, %c0_21] : memref<96x32xbf16, #tpu.memory_space<vmem>>, vector<96x32xbf16>
      %cst_22 = arith.constant dense<0.000000e+00> : vector<16x32xf32>
      %30 = tpu.matmul %28, %29, %cst_22 {dimension_numbers = #tpu.dot_dimension_numbers<[1], [0], [0], [1], [0, 0, 1, 1], [], []>} : vector<16x96xbf16>, vector<96x32xbf16>, vector<16x32xf32> -> vector<16x32xf32>
      %c0_23 = arith.constant 0 : index
      %c0_24 = arith.constant 0 : index
      %31 = vector.load %arg8[%c0_23, %c0_24] : memref<1x32xf32, #tpu.memory_space<vmem>>, vector<1x32xf32>
      %32 = vector.broadcast %31 : vector<1x32xf32> to vector<16x32xf32>
      %33 = arith.addf %30, %32 : vector<16x32xf32>
      %cst_25 = arith.constant 2.000000e-01 : f32
      %34 = vector.broadcast %cst_25 : f32 to vector<16x32xf32>
      %35 = arith.mulf %34, %33 : vector<16x32xf32>
      %36 = arith.maximumf %33, %35 : vector<16x32xf32>
      %c0_26 = arith.constant 0 : index
      %c0_27 = arith.constant 0 : index
      %37 = vector.load %arg9[%c0_26, %c0_27] : memref<1x32xbf16, #tpu.memory_space<vmem>>, vector<1x32xbf16>
      %38 = arith.extf %37 : vector<1x32xbf16> to vector<1x32xf32>
      %39 = vector.broadcast %38 : vector<1x32xf32> to vector<16x32xf32>
      %40 = arith.mulf %36, %39 : vector<16x32xf32>
      %cst_28 = arith.constant dense<0.000000e+00> : vector<16xf32>
      %41 = vector.multi_reduction <add>, %40, %cst_28 [1] : vector<16x32xf32> to vector<16xf32>
      %42 = vector.shape_cast %41 : vector<16xf32> to vector<16x1xf32>
      %c0_29 = arith.constant 0 : index
      %c0_30 = arith.constant 0 : index
      %43 = vector.load %arg10[%c0_29, %c0_30] : memref<1x1xf32, #tpu.memory_space<vmem>>, vector<1x1xf32>
      %44 = vector.broadcast %43 : vector<1x1xf32> to vector<16x1xf32>
      %45 = arith.addf %42, %44 : vector<16x1xf32>
      %46 = vector.shape_cast %45 : vector<16x1xf32> to vector<16x1xf32>
      %47 = vector.broadcast %46 : vector<16x1xf32> to vector<16x128xf32>
      %c0_31 = arith.constant 0 : index
      %c0_32 = arith.constant 0 : index
      %48 = vector.load %arg11[%c0_31, %c0_32] : memref<16x128xf32, #tpu.memory_space<vmem>>, vector<16x128xf32>
      tpu.vector_store %arg11[%c0_31, %c0_32], %47 {strides = array<i32>} : memref<16x128xf32, #tpu.memory_space<vmem>>, vector<16x128xf32>,
    } else {
    }
    return
  }
  func.func @transform_0(%arg0: i32, %arg1: i32) -> (i32, i32) {
    %c0_i32 = arith.constant 0 : i32
    return %arg0, %arg1 : i32, i32
  }
  func.func @transform_1(%arg0: i32, %arg1: i32) -> (i32, i32) {
    %c0_i32 = arith.constant 0 : i32
    %c0_i32_0 = arith.constant 0 : i32
    return %arg1, %c0_i32 : i32, i32
  }
  func.func @transform_2(%arg0: i32, %arg1: i32) -> (i32, i32) {
    %c0_i32 = arith.constant 0 : i32
    %c0_i32_0 = arith.constant 0 : i32
    %c0_i32_1 = arith.constant 0 : i32
    return %c0_i32, %c0_i32_0 : i32, i32
  }
  func.func @transform_3(%arg0: i32, %arg1: i32) -> (i32, i32) {
    %c0_i32 = arith.constant 0 : i32
    %c0_i32_0 = arith.constant 0 : i32
    %c0_i32_1 = arith.constant 0 : i32
    return %c0_i32, %c0_i32_0 : i32, i32
  }
  func.func @transform_4(%arg0: i32, %arg1: i32) -> (i32, i32) {
    %c0_i32 = arith.constant 0 : i32
    %c0_i32_0 = arith.constant 0 : i32
    %c0_i32_1 = arith.constant 0 : i32
    return %c0_i32, %c0_i32_0 : i32, i32
  }
  func.func @transform_5(%arg0: i32, %arg1: i32) -> (i32, i32) {
    %c0_i32 = arith.constant 0 : i32
    %c0_i32_0 = arith.constant 0 : i32
    %c0_i32_1 = arith.constant 0 : i32
    return %c0_i32, %c0_i32_0 : i32, i32
  }
  func.func @transform_6(%arg0: i32, %arg1: i32) -> (i32, i32) {
    %c0_i32 = arith.constant 0 : i32
    %c0_i32_0 = arith.constant 0 : i32
    %c0_i32_1 = arith.constant 0 : i32
    return %c0_i32, %c0_i32_0 : i32, i32
  }
  func.func @transform_7(%arg0: i32, %arg1: i32) -> (i32, i32) {
    %c0_i32 = arith.constant 0 : i32
    %c0_i32_0 = arith.constant 0 : i32
    %c0_i32_1 = arith.constant 0 : i32
    return %c0_i32, %c0_i32_0 : i32, i32
  }
  func.func @transform_8(%arg0: i32, %arg1: i32) -> (i32, i32) {
    %c0_i32 = arith.constant 0 : i32
    %c0_i32_0 = arith.constant 0 : i32
    %c0_i32_1 = arith.constant 0 : i32
    return %c0_i32, %c0_i32_0 : i32, i32
  }
  func.func @transform_9(%arg0: i32, %arg1: i32) -> (i32, i32) {
    %c0_i32 = arith.constant 0 : i32
    %c0_i32_0 = arith.constant 0 : i32
    return %arg0, %c0_i32 : i32, i32
  }
}

</mosaic_0001>

<llo_original>
// kernel: tpu_custom_call.1
$region0: #{tpu_custom_call.1}
  #allocation0 [shape = 'u32[]', space=smem, size = 0x4, offset = 0x4, fixed_abs, tag = 'smem constant byte address 0x4 - core index']
  #allocation1 [shape = 'u32[144,128]{1,0:T(1,128)}', space=vmem, size = 0x12000, scoped, tag = 'internal scratch']
  #allocation2 [shape = 'f32[16,384]{1,0:T(8,128)}', space=vmem, size = 0x6000, scoped, tag = 'scratch operand']
  #allocation3 [shape = 'f32[1,1]{1,0:T(1,128)S(1)}', space=vmem, size = 0x200, scoped, tag = 'scoped memory for tpu_custom_call.1']
  %s0 = inlined_call_operand.vmem [shape: bf16[16,768], index: 0, kind: input, shape index: {}]
  %s1 = inlined_call_operand.hbm [shape: bf16[768,384], index: 1, kind: input, shape index: {}]
  %s2 = inlined_call_operand.vmem [shape: f32[1,384], index: 2, kind: input, shape index: {}]
  %s3 = inlined_call_operand.vmem [shape: bf16[384,96], index: 3, kind: input, shape index: {}]
  %s4 = inlined_call_operand.vmem [shape: f32[1,96], index: 4, kind: input, shape index: {}]
  %s5 = inlined_call_operand.vmem [shape: bf16[96,32], index: 5, kind: input, shape index: {}]
  %s6 = inlined_call_operand.vmem [shape: f32[1,32], index: 6, kind: input, shape index: {}]
  %s7 = inlined_call_operand.vmem [shape: bf16[1,32], index: 7, kind: input, shape index: {}]
  %s8 = inlined_call_operand.<no memory space> [shape: f32[1,1], index: 8, kind: input, shape index: {}]
  %s9 = inlined_call_operand.hbm [shape: f32[16,128], index: 9, kind: output, shape index: {}]
  %s10 = sld [smem:[#allocation0]]
  $region119: #{tpu_custom_call.1} parent=0
    _
  %s12 = ssub.s32 1, %s10
  %s13 = scalar_select 0, %s12, %s10
  %v14 = vstv %s8
  %15 = vst [vmem:[#allocation3] sm:$0x1] %v14
  $region1: #{tpu_custom_call.1} parent=0
    #allocation4 [shape = 'u8[16384]{0}', space=vmem, size = 0x4000, scoped, tag = 'input window, operand 0']
    #allocation5 [shape = 'u8[393216]{0}', space=vmem, size = 0x60000, scoped, tag = 'input window, operand 1']
    #allocation6 [shape = 's32[2]{0}', space=sflag, size = 0x8, scoped, tag = 'scoped memory for tpu_custom_call.1']
    #allocation7 [shape = 's32[2]{0}', space=sflag, size = 0x8, scoped, tag = 'scoped memory for tpu_custom_call.1']
    #allocation8 [shape = 'u8[8192]{0}', space=vmem, size = 0x2000, scoped, tag = 'output window, operand 0, single buffered']
    %16 = vsyncpa [#allocation6], 0
    %s17 = scalar_lea.sflag [#allocation6], 1
    %18 = vsyncpa %s17, 0
    %19 = vsyncpa [#allocation7], 0
    loop: start=0, step=1, limit=5
    $region2: #{tpu_custom_call.1} parent=1 // loop_pre_header
      _
    $region3: #{tpu_custom_call.1} parent=1 // loop_header
      %s21 = sphi 0, %s25
      %p22 = scmp.ge.s32.totalorder %s21, 5
      %s28 = sphi 0, %s40
      %s29 = sphi 0, %s36
      %s30 = sphi 0, %s28
      %s31 = sphi 0, %s29
      %s32 = sphi 0, %s30
      %s33 = sphi 0, %s31
      %s45 = sphi 0, %s47
      %s48 = sphi 0, %s45
      %s49 = sphi 0, %s48
      %s65 = sphi 0, %s49
      %s71 = sphi 0, %s73
      %s74 = sphi 0, %s71
      %s75 = sphi 0, %s74
      %s91 = sphi 0, %s75
      %s95 = sphi 0, %s95
      %s97 = sphi 0, %s95
      %s98 = sphi 0, %s97
      %s112 = sphi 0, %s98
      %s116 = sphi 0, %s116
      %s118 = sphi 0, %s116
      %s119 = sphi 0, %s118
      %s133 = sphi 0, %s119
      %s137 = sphi 0, %s137
      %s139 = sphi 0, %s137
      %s140 = sphi 0, %s139
      %s154 = sphi 0, %s140
      %s158 = sphi 0, %s158
      %s160 = sphi 0, %s158
      %s161 = sphi 0, %s160
      %s175 = sphi 0, %s161
      %s179 = sphi 0, %s179
      %s181 = sphi 0, %s179
      %s182 = sphi 0, %s181
      %s196 = sphi 0, %s182
      %s200 = sphi 0, %s200
      %s202 = sphi 0, %s200
      %s203 = sphi 0, %s202
      %s217 = sphi 0, %s203
      %s221 = sphi 0, %s221
      %s223 = sphi 0, %s221
      %s224 = sphi 0, %s223
      %s238 = sphi 0, %s224
      %s244 = sphi 0, %s246
      %s247 = sphi 0, %s244
      %s248 = sphi 0, %s247
      %s264 = sphi 0, %s248
    $region4: #{tpu_custom_call.1} parent=1 // loop_header_branch
      %24 = sbr.rel (%p22) target = $region8
    $region5: #{tpu_custom_call.1} parent=1 // loop_body
      %s26 = ssub.s32 %s21, 1
      %s27 = ssub.s32 %s21, 2
      %s34 = sadd.s32 1, %s29
      %p35 = scmp.ge.s32.totalorder %s34, 3
      %s36 = scalar_select %p35, 0, %s34
      %s37 = sadd.s32 1, %s28
      %s38 = scalar_select %p35, %s37, %s28
      %p39 = scmp.ge.s32.totalorder %s38, 1
      %s40 = scalar_select %p39, 0, %s38
      %s41 = ssub.s32 %s28, %s40
      %s42 = ssub.s32 %s29, %s36
      %s43 = sor.u32 %s41, %s42
      %p44 = scmp.eq.s32.totalorder %s43, 0
      %s46 = sadd.s32 %s45, 1
      %s47 = scalar_select %p44, %s45, %s46
      %p50 = pneg %p44
      %p51 = scmp.eq.s32.totalorder %s21, 2
      %p52 = por %p50, %p51
      %p53 = scmp.ne.s32.totalorder %s45, %s48
      %p54 = scmp.eq.s32.totalorder %s21, 0
      %p55 = por %p53, %p54
      %p56 = scmp.ne.s32.totalorder %s45, %s48
      %p57 = scmp.eq.s32.totalorder %s26, 2
      %p58 = por %p56, %p57
      %p59 = scmp.ne.s32.totalorder %s48, %s49
      %p60 = scmp.eq.s32.totalorder %s26, 0
      %p61 = por %p59, %p60
      %p62 = scmp.ne.s32.totalorder %s48, %s49
      %p63 = scmp.eq.s32.totalorder %s27, 2
      %p64 = por %p62, %p63
      %p66 = scmp.ne.s32.totalorder %s49, %s65
      %p67 = scmp.eq.s32.totalorder %s27, 0
      %p68 = por %p66, %p67
      %s69 = ssub.s32 %s29, %s36
      %p70 = scmp.eq.s32.totalorder %s69, 0
      %s72 = sadd.s32 %s71, 1
      %s73 = scalar_select %p70, %s71, %s72
      %p76 = pneg %p70
      %p77 = scmp.eq.s32.totalorder %s21, 2
      %p78 = por %p76, %p77
      %p79 = scmp.ne.s32.totalorder %s71, %s74
      %p80 = scmp.eq.s32.totalorder %s21, 0
      %p81 = por %p79, %p80
      %p82 = scmp.ne.s32.totalorder %s71, %s74
      %p83 = scmp.eq.s32.totalorder %s26, 2
      %p84 = por %p82, %p83
      %p85 = scmp.ne.s32.totalorder %s74, %s75
      %p86 = scmp.eq.s32.totalorder %s26, 0
      %p87 = por %p85, %p86
      %p88 = scmp.ne.s32.totalorder %s74, %s75
      %p89 = scmp.eq.s32.totalorder %s27, 2
      %p90 = por %p88, %p89
      %p92 = scmp.ne.s32.totalorder %s75, %s91
      %p93 = scmp.eq.s32.totalorder %s27, 0
      %p94 = por %p92, %p93
      %s96 = sadd.s32 %s95, 1
      %p99 = scmp.eq.s32.totalorder %s21, 2
      %p100 = scmp.ne.s32.totalorder %s95, %s97
      %p101 = scmp.eq.s32.totalorder %s21, 0
      %p102 = por %p100, %p101
      %p103 = scmp.ne.s32.totalorder %s95, %s97
      %p104 = scmp.eq.s32.totalorder %s26, 2
      %p105 = por %p103, %p104
      %p106 = scmp.ne.s32.totalorder %s97, %s98
      %p107 = scmp.eq.s32.totalorder %s26, 0
      %p108 = por %p106, %p107
      %p109 = scmp.ne.s32.totalorder %s97, %s98
      %p110 = scmp.eq.s32.totalorder %s27, 2
      %p111 = por %p109, %p110
      %p113 = scmp.ne.s32.totalorder %s98, %s112
      %p114 = scmp.eq.s32.totalorder %s27, 0
      %p115 = por %p113, %p114
      %s117 = sadd.s32 %s116, 1
      %p120 = scmp.eq.s32.totalorder %s21, 2
      %p121 = scmp.ne.s32.totalorder %s116, %s118
      %p122 = scmp.eq.s32.totalorder %s21, 0
      %p123 = por %p121, %p122
      %p124 = scmp.ne.s32.totalorder %s116, %s118
      %p125 = scmp.eq.s32.totalorder %s26, 2
      %p126 = por %p124, %p125
      %p127 = scmp.ne.s32.totalorder %s118, %s119
      %p128 = scmp.eq.s32.totalorder %s26, 0
      %p129 = por %p127, %p128
      %p130 = scmp.ne.s32.totalorder %s118, %s119
      %p131 = scmp.eq.s32.totalorder %s27, 2
      %p132 = por %p130, %p131
      %p134 = scmp.ne.s32.totalorder %s119, %s133
      %p135 = scmp.eq.s32.totalorder %s27, 0
      %p136 = por %p134, %p135
      %s138 = sadd.s32 %s137, 1
      %p141 = scmp.eq.s32.totalorder %s21, 2
      %p142 = scmp.ne.s32.totalorder %s137, %s139
      %p143 = scmp.eq.s32.totalorder %s21, 0
      %p144 = por %p142, %p143
      %p145 = scmp.ne.s32.totalorder %s137, %s139
      %p146 = scmp.eq.s32.totalorder %s26, 2
      %p147 = por %p145, %p146
      %p148 = scmp.ne.s32.totalorder %s139, %s140
      %p149 = scmp.eq.s32.totalorder %s26, 0
      %p150 = por %p148, %p149
      %p151 = scmp.ne.s32.totalorder %s139, %s140
      %p152 = scmp.eq.s32.totalorder %s27, 2
      %p153 = por %p151, %p152
      %p155 = scmp.ne.s32.totalorder %s140, %s154
      %p156 = scmp.eq.s32.totalorder %s27, 0
      %p157 = por %p155, %p156
      %s159 = sadd.s32 %s158, 1
      %p162 = scmp.eq.s32.totalorder %s21, 2
      %p163 = scmp.ne.s32.totalorder %s158, %s160
      %p164 = scmp.eq.s32.totalorder %s21, 0
      %p165 = por %p163, %p164
      %p166 = scmp.ne.s32.totalorder %s158, %s160
      %p167 = scmp.eq.s32.totalorder %s26, 2
      %p168 = por %p166, %p167
      %p169 = scmp.ne.s32.totalorder %s160, %s161
      %p170 = scmp.eq.s32.totalorder %s26, 0
      %p171 = por %p169, %p170
      %p172 = scmp.ne.s32.totalorder %s160, %s161
      %p173 = scmp.eq.s32.totalorder %s27, 2
      %p174 = por %p172, %p173
      %p176 = scmp.ne.s32.totalorder %s161, %s175
      %p177 = scmp.eq.s32.totalorder %s27, 0
      %p178 = por %p176, %p177
      %s180 = sadd.s32 %s179, 1
      %p183 = scmp.eq.s32.totalorder %s21, 2
      %p184 = scmp.ne.s32.totalorder %s179, %s181
      %p185 = scmp.eq.s32.totalorder %s21, 0
      %p186 = por %p184, %p185
      %p187 = scmp.ne.s32.totalorder %s179, %s181
      %p188 = scmp.eq.s32.totalorder %s26, 2
      %p189 = por %p187, %p188
      %p190 = scmp.ne.s32.totalorder %s181, %s182
      %p191 = scmp.eq.s32.totalorder %s26, 0
      %p192 = por %p190, %p191
      %p193 = scmp.ne.s32.totalorder %s181, %s182
      %p194 = scmp.eq.s32.totalorder %s27, 2
      %p195 = por %p193, %p194
      %p197 = scmp.ne.s32.totalorder %s182, %s196
      %p198 = scmp.eq.s32.totalorder %s27, 0
      %p199 = por %p197, %p198
      %s201 = sadd.s32 %s200, 1
      %p204 = scmp.eq.s32.totalorder %s21, 2
      %p205 = scmp.ne.s32.totalorder %s200, %s202
      %p206 = scmp.eq.s32.totalorder %s21, 0
      %p207 = por %p205, %p206
      %p208 = scmp.ne.s32.totalorder %s200, %s202
      %p209 = scmp.eq.s32.totalorder %s26, 2
      %p210 = por %p208, %p209
      %p211 = scmp.ne.s32.totalorder %s202, %s203
      %p212 = scmp.eq.s32.totalorder %s26, 0
      %p213 = por %p211, %p212
      %p214 = scmp.ne.s32.totalorder %s202, %s203
      %p215 = scmp.eq.s32.totalorder %s27, 2
      %p216 = por %p214, %p215
      %p218 = scmp.ne.s32.totalorder %s203, %s217
      %p219 = scmp.eq.s32.totalorder %s27, 0
      %p220 = por %p218, %p219
      %s222 = sadd.s32 %s221, 1
      %p225 = scmp.eq.s32.totalorder %s21, 2
      %p226 = scmp.ne.s32.totalorder %s221, %s223
      %p227 = scmp.eq.s32.totalorder %s21, 0
      %p228 = por %p226, %p227
      %p229 = scmp.ne.s32.totalorder %s221, %s223
      %p230 = scmp.eq.s32.totalorder %s26, 2
      %p231 = por %p229, %p230
      %p232 = scmp.ne.s32.totalorder %s223, %s224
      %p233 = scmp.eq.s32.totalorder %s26, 0
      %p234 = por %p232, %p233
      %p235 = scmp.ne.s32.totalorder %s223, %s224
      %p236 = scmp.eq.s32.totalorder %s27, 2
      %p237 = por %p235, %p236
      %p239 = scmp.ne.s32.totalorder %s224, %s238
      %p240 = scmp.eq.s32.totalorder %s27, 0
      %p241 = por %p239, %p240
      %s242 = ssub.s32 %s28, %s40
      %p243 = scmp.eq.s32.totalorder %s242, 0
      %s245 = sadd.s32 %s244, 1
      %s246 = scalar_select %p243, %s244, %s245
      %p249 = pneg %p243
      %p250 = scmp.eq.s32.totalorder %s21, 2
      %p251 = por %p249, %p250
      %p252 = scmp.ne.s32.totalorder %s244, %s247
      %p253 = scmp.eq.s32.totalorder %s21, 0
      %p254 = por %p252, %p253
      %p255 = scmp.ne.s32.totalorder %s244, %s247
      %p256 = scmp.eq.s32.totalorder %s26, 2
      %p257 = por %p255, %p256
      %p258 = scmp.ne.s32.totalorder %s247, %s248
      %p259 = scmp.eq.s32.totalorder %s26, 0
      %p260 = por %p258, %p259
      %p261 = scmp.ne.s32.totalorder %s247, %s248
      %p262 = scmp.eq.s32.totalorder %s27, 2
      %p263 = por %p261, %p262
      %p265 = scmp.ne.s32.totalorder %s248, %s264
      %p266 = scmp.eq.s32.totalorder %s27, 0
      %p267 = por %p265, %p266
      %p268 = scmp.le.s32.totalorder 1, %s21
      %p269 = scmp.lt.s32.totalorder %s21, 4
      %p270 = pnand %p268, %p269
      %p271 = pneg %p270
      // Predicated region
      $region9: #{tpu_custom_call.1} parent=5 // pred_check
        _
      $region10: #{tpu_custom_call.1} parent=5 // pred_check_branch
        %273 = sbr.rel (%p270) target = $region12
      $region11: #{tpu_custom_call.1} parent=5 // pred_region
        %s274 = ssub.s32 %s21, 1
        // Predicated region
        $region13: #{tpu_custom_call.1} parent=11 // pred_check
          %p275 = pneg %p108
        $region14: #{tpu_custom_call.1} parent=11 // pred_check_branch
          %277 = sbr.rel (%p275) target = $region16
        $region15: #{tpu_custom_call.1} parent=11 // pred_region
          _
        $region16: #{tpu_custom_call.1} parent=11 // pred_fallthru
          _
        // Predicated region
        $region17: #{tpu_custom_call.1} parent=11 // pred_check
          %p278 = pneg %p129
        $region18: #{tpu_custom_call.1} parent=11 // pred_check_branch
          %280 = sbr.rel (%p278) target = $region20
        $region19: #{tpu_custom_call.1} parent=11 // pred_region
          _
        $region20: #{tpu_custom_call.1} parent=11 // pred_fallthru
          _
        // Predicated region
        $region21: #{tpu_custom_call.1} parent=11 // pred_check
          %p281 = pneg %p150
        $region22: #{tpu_custom_call.1} parent=11 // pred_check_branch
          %283 = sbr.rel (%p281) target = $region24
        $region23: #{tpu_custom_call.1} parent=11 // pred_region
          _
        $region24: #{tpu_custom_call.1} parent=11 // pred_fallthru
          _
        // Predicated region
        $region25: #{tpu_custom_call.1} parent=11 // pred_check
          %p284 = pneg %p171
        $region26: #{tpu_custom_call.1} parent=11 // pred_check_branch
          %286 = sbr.rel (%p284) target = $region28
        $region27: #{tpu_custom_call.1} parent=11 // pred_region
          _
        $region28: #{tpu_custom_call.1} parent=11 // pred_fallthru
          _
        // Predicated region
        $region29: #{tpu_custom_call.1} parent=11 // pred_check
          %p287 = pneg %p192
        $region30: #{tpu_custom_call.1} parent=11 // pred_check_branch
          %289 = sbr.rel (%p287) target = $region32
        $region31: #{tpu_custom_call.1} parent=11 // pred_region
          _
        $region32: #{tpu_custom_call.1} parent=11 // pred_fallthru
          _
        // Predicated region
        $region33: #{tpu_custom_call.1} parent=11 // pred_check
          %p290 = pneg %p213
        $region34: #{tpu_custom_call.1} parent=11 // pred_check_branch
          %292 = sbr.rel (%p290) target = $region36
        $region35: #{tpu_custom_call.1} parent=11 // pred_region
          _
        $region36: #{tpu_custom_call.1} parent=11 // pred_fallthru
          _
        // Predicated region
        $region37: #{tpu_custom_call.1} parent=11 // pred_check
          %p293 = pneg %p234
        $region38: #{tpu_custom_call.1} parent=11 // pred_check_branch
          %295 = sbr.rel (%p293) target = $region40
        $region39: #{tpu_custom_call.1} parent=11 // pred_region
          _
        $region40: #{tpu_custom_call.1} parent=11 // pred_fallthru
          _
      $region12: #{tpu_custom_call.1} parent=5 // pred_fallthru
        _
      %p296 = scmp.lt.s32.totalorder %s21, 3
      // Predicated region
      $region41: #{tpu_custom_call.1} parent=5 // pred_check
        %p297 = pneg %p296
      $region42: #{tpu_custom_call.1} parent=5 // pred_check_branch
        %299 = sbr.rel (%p297) target = $region44
      $region43: #{tpu_custom_call.1} parent=5 // pred_region
        // Predicated region
        $region45: #{tpu_custom_call.1} parent=43 // pred_check
          %p300 = pneg %p55
        $region46: #{tpu_custom_call.1} parent=43 // pred_check_branch
          %302 = sbr.rel (%p300) target = $region48
        $region47: #{tpu_custom_call.1} parent=43 // pred_region
          %s303 = sand.u32 %s45, 1
          %s304 = sand.u32 %s45, 1
          %s305 = smul.addr %s304, 16
          %s306 = scalar_lea.vmem [#allocation4], %s305
          %s307 = smul.u32 2, %s28
          %s308 = smul.u32 2, %s29
          %s309 = smul.addr %s307, 6
          %s310 = sadd.s32 %s308, %s309
          %s311 = smul.addr %s310, 4
          %s312 = scalar_lea.vmem %s0, %s311
          // Predicated region
          $region49: #{tpu_custom_call.1} parent=47 // pred_check
            _
          $region50: #{tpu_custom_call.1} parent=47 // pred_check_branch
            %314 = sbr.rel (0) target = $region52
          $region51: #{tpu_custom_call.1} parent=47 // pred_region
            // Predicated region
            $region53: #{tpu_custom_call.1} parent=51 // pred_check
              _
            $region54: #{tpu_custom_call.1} parent=51 // pred_check_branch
              %316 = sbr.rel (0) target = $region56
            $region55: #{tpu_custom_call.1} parent=51 // pred_region
              // Predicated region
              $region68: #{tpu_custom_call.1} parent=55 // pred_check
                _
              $region69: #{tpu_custom_call.1} parent=55 // pred_check_branch
                %334 = sbr.rel (0) target = $region71
              $region70: #{tpu_custom_call.1} parent=55 // pred_region
                loop: start=0, step=1, limit=1
                $region72: #{tpu_custom_call.1} parent=70 // loop_pre_header
                  _
                $region73: #{tpu_custom_call.1} parent=70 // loop_header
                  %s336 = sphi 0, %s340
                  %p337 = scmp.ge.s32.totalorder %s336, 1
                  %s341 = sphi %s312, %s312
                  %s342 = sphi %s306, %s306
                $region74: #{tpu_custom_call.1} parent=70 // loop_header_branch
                  %339 = sbr.rel (%p337) target = $region78
                $region75: #{tpu_custom_call.1} parent=70 // loop_body
                  %v343 = vld [vmem:[%s341] sm:$0xff]
                  %344 = vst [vmem:[%s342] sm:$0xff] %v343
                  %v345 = vld [vmem:[%s341 + $0x18] sm:$0xff]
                  %346 = vst [vmem:[%s342 + $0x8] sm:$0xff] %v345
                $region76: #{tpu_custom_call.1} parent=70 // loop_footer
                  %s340 = sadd.s32 1, %s336
                $region77: #{tpu_custom_call.1} parent=70 // loop_footer_branch
                  %335 = sbr.rel target = $region73
                $region78: #{tpu_custom_call.1} parent=70 // loop_exit
                  _
              $region71: #{tpu_custom_call.1} parent=55 // pred_fallthru
                _
              // Predicated region
              $region79: #{tpu_custom_call.1} parent=55 // pred_check
                _
              $region80: #{tpu_custom_call.1} parent=55 // pred_check_branch
                %348 = sbr.rel target = $region82
              $region81: #{tpu_custom_call.1} parent=55 // pred_region
                _
              $region82: #{tpu_custom_call.1} parent=55 // pred_fallthru
                _
            $region56: #{tpu_custom_call.1} parent=51 // pred_fallthru
              _
            // Predicated region
            $region57: #{tpu_custom_call.1} parent=51 // pred_check
              _
            $region58: #{tpu_custom_call.1} parent=51 // pred_check_branch
              %318 = sbr.rel target = $region60
            $region59: #{tpu_custom_call.1} parent=51 // pred_region
              %s320 = ssub.s32 256, 1
              loop: start=0, step=1, limit=1
              $region61: #{tpu_custom_call.1} parent=59 // loop_pre_header
                _
              $region62: #{tpu_custom_call.1} parent=59 // loop_header
                %s322 = sphi 0, %s326
                %p323 = scmp.ge.s32.totalorder %s322, 1
                %s327 = sphi %s312, %s312
                %s328 = sphi %s306, %s306
              $region63: #{tpu_custom_call.1} parent=59 // loop_header_branch
                %325 = sbr.rel (%p323) target = $region67
              $region64: #{tpu_custom_call.1} parent=59 // loop_body
                %v329 = vld [vmem:[%s327] sm:%s320]
                %330 = vst [vmem:[%s328] sm:%s320] %v329
                %v331 = vld [vmem:[%s327 + $0x18] sm:%s320]
                %332 = vst [vmem:[%s328 + $0x8] sm:%s320] %v331
              $region65: #{tpu_custom_call.1} parent=59 // loop_footer
                %s326 = sadd.s32 1, %s322
              $region66: #{tpu_custom_call.1} parent=59 // loop_footer_branch
                %321 = sbr.rel target = $region62
              $region67: #{tpu_custom_call.1} parent=59 // loop_exit
                _
            $region60: #{tpu_custom_call.1} parent=51 // pred_fallthru
              _
          $region52: #{tpu_custom_call.1} parent=47 // pred_fallthru
            _
          %349 = vnop
        $region48: #{tpu_custom_call.1} parent=43 // pred_fallthru
          _
        // Predicated region
        $region83: #{tpu_custom_call.1} parent=43 // pred_check
          %p350 = pneg %p81
        $region84: #{tpu_custom_call.1} parent=43 // pred_check_branch
          %352 = sbr.rel (%p350) target = $region86
        $region85: #{tpu_custom_call.1} parent=43 // pred_region
          %s353 = sand.u32 %s71, 1
          %s354 = scalar_lea.sflag [#allocation6], %s353
          %s355 = sand.u32 %s71, 1
          %s356 = smul.addr %s355, 384
          %s357 = scalar_lea.vmem [#allocation5], %s356
          %s358 = smul.u32 32, %s29
          %s360 = ssub.s32 6144, 6144
          %361 = vsyncadd %s354, %s360
          %s362 = smul.addr %s358, 3
          %s363 = smul.addr %s362, 64
          %s364 = scalar_lea.hbm %s1, %s363
          %s365 = sshll.u32 %s357, 4
          %s366 = int_to_ptr.vmem [resolvable:$true] %s365
          %371 = dma.hbm_to_vmem [thread:$0]  %s364, 6144, %s366, %s354, 192, 192, 12
        $region86: #{tpu_custom_call.1} parent=43 // pred_fallthru
          _
      $region44: #{tpu_custom_call.1} parent=5 // pred_fallthru
        _
      %p372 = scmp.le.s32.totalorder 1, %s21
      %p373 = scmp.lt.s32.totalorder %s21, 4
      %p374 = pnand %p372, %p373
      %p375 = pneg %p374
      // Predicated region
      $region87: #{tpu_custom_call.1} parent=5 // pred_check
        _
      $region88: #{tpu_custom_call.1} parent=5 // pred_check_branch
        %377 = sbr.rel (%p374) target = $region90
      $region89: #{tpu_custom_call.1} parent=5 // pred_region
        %s378 = ssub.s32 %s21, 1
        %s379 = sand.u32 %s48, 1
        %s380 = sand.u32 %s48, 1
        %s381 = smul.addr %s380, 16
        %s382 = scalar_lea.vmem [#allocation4], %s381
        // Predicated region
        $region91: #{tpu_custom_call.1} parent=89 // pred_check
          %p383 = pneg %p61
        $region92: #{tpu_custom_call.1} parent=89 // pred_check_branch
          %385 = sbr.rel (%p383) target = $region94
        $region93: #{tpu_custom_call.1} parent=89 // pred_region
          _
        $region94: #{tpu_custom_call.1} parent=89 // pred_fallthru
          _
        %s386 = sand.u32 %s74, 1
        %s387 = scalar_lea.sflag [#allocation6], %s386
        %s388 = sand.u32 %s74, 1
        %s389 = smul.addr %s388, 384
        %s390 = scalar_lea.vmem [#allocation5], %s389
        // Predicated region
        $region95: #{tpu_custom_call.1} parent=89 // pred_check
          %p391 = pneg %p87
        $region96: #{tpu_custom_call.1} parent=89 // pred_check_branch
          %393 = sbr.rel (%p391) target = $region98
        $region97: #{tpu_custom_call.1} parent=89 // pred_region
          %394 = dma.done %s387, 6144
        $region98: #{tpu_custom_call.1} parent=89 // pred_fallthru
          _
        %s395 = sand.u32 %s48, 1
        %s396 = sand.u32 %s48, 1
        %s397 = smul.addr %s396, 16
        %s398 = scalar_lea.vmem [#allocation4], %s397
        %p399 = pneg %p61
        %p400 = pneg %p58
        %s401 = sand.u32 %s74, 1
        %s402 = scalar_lea.sflag [#allocation6], %s401
        %s403 = sand.u32 %s74, 1
        %s404 = smul.addr %s403, 384
        %s405 = scalar_lea.vmem [#allocation5], %s404
        %p406 = pneg %p87
        %p407 = pneg %p84
        %p408 = pneg %p108
        %p409 = pneg %p105
        %p410 = pneg %p129
        %p411 = pneg %p126
        %p412 = pneg %p150
        %p413 = pneg %p147
        %p414 = pneg %p171
        %p415 = pneg %p168
        %p416 = pneg %p192
        %p417 = pneg %p189
        %p418 = pneg %p213
        %p419 = pneg %p210
        %p420 = pneg %p234
        %p421 = pneg %p231
        %p422 = pneg %p260
        %p423 = pneg %p257
        %s424 = smul.u32 2, %s30
        %s425 = smul.u32 2, %s31
        %s426 = smul.u32 32, %s31
        %s427 = smul.u32 2, %s30
        %p429 = scmp.eq.s32.totalorder %s31, 0
        // Predicated region
        $region99: #{tpu_custom_call.1} parent=89 // pred_check
          %p430 = pneg %p429
        $region100: #{tpu_custom_call.1} parent=89 // pred_check_branch
          %432 = sbr.rel (%p430) target = $region102
        $region101: #{tpu_custom_call.1} parent=89 // pred_region
          %433 = vst [vmem:[#allocation2] sm:$0xff] 0.0
          %434 = vst [vmem:[#allocation2 + $0x8] sm:$0xff] 0.0
          %435 = vst [vmem:[#allocation2 + $0x10] sm:$0xff] 0.0
          %436 = vst [vmem:[#allocation2 + $0x18] sm:$0xff] 0.0
          %437 = vst [vmem:[#allocation2 + $0x20] sm:$0xff] 0.0
          %438 = vst [vmem:[#allocation2 + $0x28] sm:$0xff] 0.0
        $region102: #{tpu_custom_call.1} parent=89 // pred_fallthru
          _
        %v439 = vld [vmem:[#allocation2] sm:$0xff]
        %v440 = vld [vmem:[#allocation2 + $0x8] sm:$0xff]
        %v441 = vld [vmem:[#allocation2 + $0x10] sm:$0xff]
        %v442 = vld [vmem:[#allocation2 + $0x18] sm:$0xff]
        %v443 = vld [vmem:[#allocation2 + $0x20] sm:$0xff]
        %v444 = vld [vmem:[#allocation2 + $0x28] sm:$0xff]
        %v445 = vld [vmem:[%s382] sm:$0xff]
        %v446 = vld [vmem:[%s382 + $0x8] sm:$0xff]
        %v447 = vld [vmem:[%s390] sm:$0xff]
        %v448 = vld [vmem:[%s390 + $0x8] sm:$0xf]
        %v449 = vld [vmem:[%s390 + $0xc] sm:$0xff]
        %v450 = vld [vmem:[%s390 + $0x14] sm:$0xf]
        %v451 = vld [vmem:[%s390 + $0x18] sm:$0xff]
        %v452 = vld [vmem:[%s390 + $0x20] sm:$0xf]
        %v453 = vld [vmem:[%s390 + $0x24] sm:$0xff]
        %v454 = vld [vmem:[%s390 + $0x2c] sm:$0xf]
        %v455 = vld [vmem:[%s390 + $0x30] sm:$0xff]
        %v456 = vld [vmem:[%s390 + $0x38] sm:$0xf]
        %v457 = vld [vmem:[%s390 + $0x3c] sm:$0xff]
        %v458 = vld [vmem:[%s390 + $0x44] sm:$0xf]
        %v459 = vld [vmem:[%s390 + $0x48] sm:$0xff]
        %v460 = vld [vmem:[%s390 + $0x50] sm:$0xf]
        %v461 = vld [vmem:[%s390 + $0x54] sm:$0xff]
        %v462 = vld [vmem:[%s390 + $0x5c] sm:$0xf]
        %v463 = vld [vmem:[%s390 + $0x60] sm:$0xff]
        %v464 = vld [vmem:[%s390 + $0x68] sm:$0xf]
        %v465 = vld [vmem:[%s390 + $0x6c] sm:$0xff]
        %v466 = vld [vmem:[%s390 + $0x74] sm:$0xf]
        %v467 = vld [vmem:[%s390 + $0x78] sm:$0xff]
        %v468 = vld [vmem:[%s390 + $0x80] sm:$0xf]
        %v469 = vld [vmem:[%s390 + $0x84] sm:$0xff]
        %v470 = vld [vmem:[%s390 + $0x8c] sm:$0xf]
        %v471 = vld [vmem:[%s390 + $0x90] sm:$0xff]
        %v472 = vld [vmem:[%s390 + $0x98] sm:$0xf]
        %v473 = vld [vmem:[%s390 + $0x9c] sm:$0xff]
        %v474 = vld [vmem:[%s390 + $0xa4] sm:$0xf]
        %v475 = vld [vmem:[%s390 + $0xa8] sm:$0xff]
        %v476 = vld [vmem:[%s390 + $0xb0] sm:$0xf]
        %v477 = vld [vmem:[%s390 + $0xb4] sm:$0xff]
        %v478 = vld [vmem:[%s390 + $0xbc] sm:$0xf]
        %v479 = vld [vmem:[%s390 + $0xc0] sm:$0xff]
        %v480 = vld [vmem:[%s390 + $0xc8] sm:$0xf]
        %v481 = vld [vmem:[%s390 + $0xcc] sm:$0xff]
        %v482 = vld [vmem:[%s390 + $0xd4] sm:$0xf]
        %v483 = vld [vmem:[%s390 + $0xd8] sm:$0xff]
        %v484 = vld [vmem:[%s390 + $0xe0] sm:$0xf]
        %v485 = vld [vmem:[%s390 + $0xe4] sm:$0xff]
        %v486 = vld [vmem:[%s390 + $0xec] sm:$0xf]
        %v487 = vld [vmem:[%s390 + $0xf0] sm:$0xff]
        %v488 = vld [vmem:[%s390 + $0xf8] sm:$0xf]
        %v489 = vld [vmem:[%s390 + $0xfc] sm:$0xff]
        %v490 = vld [vmem:[%s390 + $0x104] sm:$0xf]
        %v491 = vld [vmem:[%s390 + $0x108] sm:$0xff]
        %v492 = vld [vmem:[%s390 + $0x110] sm:$0xf]
        %v493 = vld [vmem:[%s390 + $0x114] sm:$0xff]
        %v494 = vld [vmem:[%s390 + $0x11c] sm:$0xf]
        %v495 = vld [vmem:[%s390 + $0x120] sm:$0xff]
        %v496 = vld [vmem:[%s390 + $0x128] sm:$0xf]
        %v497 = vld [vmem:[%s390 + $0x12c] sm:$0xff]
        %v498 = vld [vmem:[%s390 + $0x134] sm:$0xf]
        %v499 = vld [vmem:[%s390 + $0x138] sm:$0xff]
        %v500 = vld [vmem:[%s390 + $0x140] sm:$0xf]
        %v501 = vld [vmem:[%s390 + $0x144] sm:$0xff]
        %v502 = vld [vmem:[%s390 + $0x14c] sm:$0xf]
        %v503 = vld [vmem:[%s390 + $0x150] sm:$0xff]
        %v504 = vld [vmem:[%s390 + $0x158] sm:$0xf]
        %v505 = vld [vmem:[%s390 + $0x15c] sm:$0xff]
        %v506 = vld [vmem:[%s390 + $0x164] sm:$0xf]
        %v507 = vld [vmem:[%s390 + $0x168] sm:$0xff]
        %v508 = vld [vmem:[%s390 + $0x170] sm:$0xf]
        %v509 = vld [vmem:[%s390 + $0x174] sm:$0xff]
        %v510 = vld [vmem:[%s390 + $0x17c] sm:$0xf]
        %v513 = vunpack.c.l.b16 %v445
        %v514 = vunpack.c.h.b16 %v445
        %v515 = vunpack.c.l.b16 %v446
        %v516 = vunpack.c.h.b16 %v446
        %v517 = vpack.c.b16 %v515, %v513
        %v518 = vpack.c.b16 %v516, %v514
        %v585 = vunpack.c.l.b16 %v447
        %v586 = vunpack.c.h.b16 %v447
        %v587 = vunpack.c.l.b16 %v448
        %v588 = vunpack.c.l.b16 %v449
        %v589 = vunpack.c.h.b16 %v449
        %v590 = vunpack.c.l.b16 %v450
        %v591 = vunpack.c.l.b16 %v451
        %v592 = vunpack.c.h.b16 %v451
        %v593 = vunpack.c.l.b16 %v452
        %v594 = vunpack.c.l.b16 %v453
        %v595 = vunpack.c.h.b16 %v453
        %v596 = vunpack.c.l.b16 %v454
        %v597 = vunpack.c.l.b16 %v455
        %v598 = vunpack.c.h.b16 %v455
        %v599 = vunpack.c.l.b16 %v456
        %v600 = vunpack.c.l.b16 %v457
        %v601 = vunpack.c.h.b16 %v457
        %v602 = vunpack.c.l.b16 %v458
        %v603 = vunpack.c.l.b16 %v459
        %v604 = vunpack.c.h.b16 %v459
        %v605 = vunpack.c.l.b16 %v460
        %v606 = vunpack.c.l.b16 %v461
        %v607 = vunpack.c.h.b16 %v461
        %v608 = vunpack.c.l.b16 %v462
        %v609 = vunpack.c.l.b16 %v463
        %v610 = vunpack.c.h.b16 %v463
        %v611 = vunpack.c.l.b16 %v464
        %v612 = vunpack.c.l.b16 %v465
        %v613 = vunpack.c.h.b16 %v465
        %v614 = vunpack.c.l.b16 %v466
        %v615 = vunpack.c.l.b16 %v467
        %v616 = vunpack.c.h.b16 %v467
        %v617 = vunpack.c.l.b16 %v468
        %v618 = vunpack.c.l.b16 %v469
        %v619 = vunpack.c.h.b16 %v469
        %v620 = vunpack.c.l.b16 %v470
        %v621 = vunpack.c.l.b16 %v471
        %v622 = vunpack.c.h.b16 %v471
        %v623 = vunpack.c.l.b16 %v472
        %v624 = vunpack.c.l.b16 %v473
        %v625 = vunpack.c.h.b16 %v473
        %v626 = vunpack.c.l.b16 %v474
        %v627 = vunpack.c.l.b16 %v475
        %v628 = vunpack.c.h.b16 %v475
        %v629 = vunpack.c.l.b16 %v476
        %v630 = vunpack.c.l.b16 %v477
        %v631 = vunpack.c.h.b16 %v477
        %v632 = vunpack.c.l.b16 %v478
        %v633 = vunpack.c.l.b16 %v479
        %v634 = vunpack.c.h.b16 %v479
        %v635 = vunpack.c.l.b16 %v480
        %v636 = vunpack.c.l.b16 %v481
        %v637 = vunpack.c.h.b16 %v481
        %v638 = vunpack.c.l.b16 %v482
        %v639 = vunpack.c.l.b16 %v483
        %v640 = vunpack.c.h.b16 %v483
        %v641 = vunpack.c.l.b16 %v484
        %v642 = vunpack.c.l.b16 %v485
        %v643 = vunpack.c.h.b16 %v485
        %v644 = vunpack.c.l.b16 %v486
        %v645 = vunpack.c.l.b16 %v487
        %v646 = vunpack.c.h.b16 %v487
        %v647 = vunpack.c.l.b16 %v488
        %v648 = vunpack.c.l.b16 %v489
        %v649 = vunpack.c.h.b16 %v489
        %v650 = vunpack.c.l.b16 %v490
        %v651 = vunpack.c.l.b16 %v491
        %v652 = vunpack.c.h.b16 %v491
        %v653 = vunpack.c.l.b16 %v492
        %v654 = vunpack.c.l.b16 %v493
        %v655 = vunpack.c.h.b16 %v493
        %v656 = vunpack.c.l.b16 %v494
        %v657 = vunpack.c.l.b16 %v495
        %v658 = vunpack.c.h.b16 %v495
        %v659 = vunpack.c.l.b16 %v496
        %v660 = vunpack.c.l.b16 %v497
        %v661 = vunpack.c.h.b16 %v497
        %v662 = vunpack.c.l.b16 %v498
        %v663 = vunpack.c.l.b16 %v499
        %v664 = vunpack.c.h.b16 %v499
        %v665 = vunpack.c.l.b16 %v500
        %v666 = vunpack.c.l.b16 %v501
        %v667 = vunpack.c.h.b16 %v501
        %v668 = vunpack.c.l.b16 %v502
        %v669 = vunpack.c.l.b16 %v503
        %v670 = vunpack.c.h.b16 %v503
        %v671 = vunpack.c.l.b16 %v504
        %v672 = vunpack.c.l.b16 %v505
        %v673 = vunpack.c.h.b16 %v505
        %v674 = vunpack.c.l.b16 %v506
        %v675 = vunpack.c.l.b16 %v507
        %v676 = vunpack.c.h.b16 %v507
        %v677 = vunpack.c.l.b16 %v508
        %v678 = vunpack.c.l.b16 %v509
        %v679 = vunpack.c.h.b16 %v509
        %v680 = vunpack.c.l.b16 %v510
        %v681 = vpack.c.b16 %v588, %v585
        %v682 = vpack.c.b16 %v589, %v586
        %v683 = vpack.c.b16 %v590, %v587
        %v684 = vpack.c.b16 %v594, %v591
        %v685 = vpack.c.b16 %v595, %v592
        %v686 = vpack.c.b16 %v596, %v593
        %v687 = vpack.c.b16 %v600, %v597
        %v688 = vpack.c.b16 %v601, %v598
        %v689 = vpack.c.b16 %v602, %v599
        %v690 = vpack.c.b16 %v606, %v603
        %v691 = vpack.c.b16 %v607, %v604
        %v692 = vpack.c.b16 %v608, %v605
        %v693 = vpack.c.b16 %v612, %v609
        %v694 = vpack.c.b16 %v613, %v610
        %v695 = vpack.c.b16 %v614, %v611
        %v696 = vpack.c.b16 %v618, %v615
        %v697 = vpack.c.b16 %v619, %v616
        %v698 = vpack.c.b16 %v620, %v617
        %v699 = vpack.c.b16 %v624, %v621
        %v700 = vpack.c.b16 %v625, %v622
        %v701 = vpack.c.b16 %v626, %v623
        %v702 = vpack.c.b16 %v630, %v627
        %v703 = vpack.c.b16 %v631, %v628
        %v704 = vpack.c.b16 %v632, %v629
        %v705 = vpack.c.b16 %v636, %v633
        %v706 = vpack.c.b16 %v637, %v634
        %v707 = vpack.c.b16 %v638, %v635
        %v708 = vpack.c.b16 %v642, %v639
        %v709 = vpack.c.b16 %v643, %v640
        %v710 = vpack.c.b16 %v644, %v641
        %v711 = vpack.c.b16 %v648, %v645
        %v712 = vpack.c.b16 %v649, %v646
        %v713 = vpack.c.b16 %v650, %v647
        %v714 = vpack.c.b16 %v654, %v651
        %v715 = vpack.c.b16 %v655, %v652
        %v716 = vpack.c.b16 %v656, %v653
        %v717 = vpack.c.b16 %v660, %v657
        %v718 = vpack.c.b16 %v661, %v658
        %v719 = vpack.c.b16 %v662, %v659
        %v720 = vpack.c.b16 %v666, %v663
        %v721 = vpack.c.b16 %v667, %v664
        %v722 = vpack.c.b16 %v668, %v665
        %v723 = vpack.c.b16 %v672, %v669
        %v724 = vpack.c.b16 %v673, %v670
        %v725 = vpack.c.b16 %v674, %v671
        %v726 = vpack.c.b16 %v678, %v675
        %v727 = vpack.c.b16 %v679, %v676
        %v728 = vpack.c.b16 %v680, %v677
        %777 = vmatprep.subr.bf16.mxu0 %v703
        %778 = vmatpush1.bf16.msra.mxu0 %v702
        %779 = vmatprep.subr.bf16.mxu0 %v700
        %780 = vmatpush1.bf16.msra.mxu0 %v699
        %781 = vmatprep.subr.bf16.mxu0 %v697
        %782 = vmatpush1.bf16.msra.mxu0 %v696
        %783 = vmatprep.subr.bf16.mxu0 %v694
        %784 = vmatpush1.bf16.msra.mxu0 %v693
        %785 = vmatprep.subr.bf16.mxu0 %v691
        %786 = vmatpush1.bf16.msra.mxu0 %v690
        %787 = vmatprep.subr.bf16.mxu0 %v688
        %788 = vmatpush1.bf16.msra.mxu0 %v687
        %789 = vmatprep.subr.bf16.mxu0 %v685
        %790 = vmatpush1.bf16.msra.mxu0 %v684
        %791 = vmatprep.subr.bf16.mxu0 %v682
        %792 = vmatpush1.bf16.msra.mxu0 %v681
        %793 = vmatprep.subr.bf16.mxu0 %v727
        %794 = vmatpush2.bf16.msra.mxu0 %v726
        %795 = vmatprep.subr.bf16.mxu0 %v724
        %796 = vmatpush2.bf16.msra.mxu0 %v723
        %797 = vmatprep.subr.bf16.mxu0 %v721
        %798 = vmatpush2.bf16.msra.mxu0 %v720
        %799 = vmatprep.subr.bf16.mxu0 %v718
        %800 = vmatpush2.bf16.msra.mxu0 %v717
        %801 = vmatprep.subr.bf16.mxu0 %v715
        %802 = vmatpush2.bf16.msra.mxu0 %v714
        %803 = vmatprep.subr.bf16.mxu0 %v712
        %804 = vmatpush2.bf16.msra.mxu0 %v711
        %805 = vmatprep.subr.bf16.mxu0 %v709
        %806 = vmatpush2.bf16.msra.mxu0 %v708
        %807 = vmatprep.subr.bf16.mxu0 %v706
        %808 = vmatpush2.bf16.msra.mxu0 %v705
        %809 = vmatprep.mubr.bf16.mxu0 %v518
        %810 = vmatmul.mubr.bf16.gmra.mxu0 %v517
        %v811 = vpop.f32.mrf.mxu0
        %v812 = vadd.f32 0.0, %v811
        %v813 = vpop.f32.mrf.mxu0
        %v814 = vadd.f32 0.0, %v813
        %v815 = vpop.f32.mrf.mxu0
        %v816 = vadd.f32 0.0, %v815
        %v817 = vpop.f32.mrf.mxu0
        %v818 = vadd.f32 0.0, %v817
        %819 = vdwg.mxu0
        %820 = vmatprep.subr.bf16.mxu0 0
        %821 = vmatpush1.bf16.msra.mxu0 %v704
        %822 = vmatprep.subr.bf16.mxu0 0
        %823 = vmatpush1.bf16.msra.mxu0 %v701
        %824 = vmatprep.subr.bf16.mxu0 0
        %825 = vmatpush1.bf16.msra.mxu0 %v698
        %826 = vmatprep.subr.bf16.mxu0 0
        %827 = vmatpush1.bf16.msra.mxu0 %v695
        %828 = vmatprep.subr.bf16.mxu0 0
        %829 = vmatpush1.bf16.msra.mxu0 %v692
        %830 = vmatprep.subr.bf16.mxu0 0
        %831 = vmatpush1.bf16.msra.mxu0 %v689
        %832 = vmatprep.subr.bf16.mxu0 0
        %833 = vmatpush1.bf16.msra.mxu0 %v686
        %834 = vmatprep.subr.bf16.mxu0 0
        %835 = vmatpush1.bf16.msra.mxu0 %v683
        %836 = vmatprep.subr.bf16.mxu0 0
        %837 = vmatpush2.bf16.msra.mxu0 %v728
        %838 = vmatprep.subr.bf16.mxu0 0
        %839 = vmatpush2.bf16.msra.mxu0 %v725
        %840 = vmatprep.subr.bf16.mxu0 0
        %841 = vmatpush2.bf16.msra.mxu0 %v722
        %842 = vmatprep.subr.bf16.mxu0 0
        %843 = vmatpush2.bf16.msra.mxu0 %v719
        %844 = vmatprep.subr.bf16.mxu0 0
        %845 = vmatpush2.bf16.msra.mxu0 %v716
        %846 = vmatprep.subr.bf16.mxu0 0
        %847 = vmatpush2.bf16.msra.mxu0 %v713
        %848 = vmatprep.subr.bf16.mxu0 0
        %849 = vmatpush2.bf16.msra.mxu0 %v710
        %850 = vmatprep.subr.bf16.mxu0 0
        %851 = vmatpush2.bf16.msra.mxu0 %v707
        %852 = vmatprep.mubr.bf16.mxu0 %v518
        %853 = vmatmul.mubr.bf16.gmra.mxu0 %v517
        %v854 = vpop.f32.mrf.mxu0
        %v855 = vadd.f32 0.0, %v854
        %v856 = vpop.f32.mrf.mxu0
        %v857 = vpop.f32.mrf.mxu0
        %v858 = vadd.f32 0.0, %v857
        %v859 = vpop.f32.mrf.mxu0
        %860 = vdwg.mxu0
        %v861 = vadd.f32 %v439, %v812
        %v862 = vadd.f32 %v440, %v814
        %v863 = vadd.f32 %v441, %v855
        %v864 = vadd.f32 %v442, %v816
        %v865 = vadd.f32 %v443, %v818
        %v866 = vadd.f32 %v444, %v858
        %867 = vst [vmem:[#allocation2] sm:$0xff] %v861
        %868 = vst [vmem:[#allocation2 + $0x8] sm:$0xff] %v862
        %869 = vst [vmem:[#allocation2 + $0x10] sm:$0xff] %v863
        %870 = vst [vmem:[#allocation2 + $0x18] sm:$0xff] %v864
        %871 = vst [vmem:[#allocation2 + $0x20] sm:$0xff] %v865
        %872 = vst [vmem:[#allocation2 + $0x28] sm:$0xff] %v866
        %p873 = scmp.eq.s32.totalorder %s31, 2
        // Predicated region
        $region103: #{tpu_custom_call.1} parent=89 // pred_check
          %p874 = pneg %p873
        $region104: #{tpu_custom_call.1} parent=89 // pred_check_branch
          %876 = sbr.rel (%p874) target = $region106
        $region105: #{tpu_custom_call.1} parent=89 // pred_region
          %v877 = vld [vmem:[#allocation2] sm:$0xff]
          %v878 = vld [vmem:[#allocation2 + $0x8] sm:$0xff]
          %v879 = vld [vmem:[#allocation2 + $0x10] sm:$0xff]
          %v880 = vld [vmem:[#allocation2 + $0x18] sm:$0xff]
          %v881 = vld [vmem:[#allocation2 + $0x20] sm:$0xff]
          %v882 = vld [vmem:[#allocation2 + $0x28] sm:$0xff]
          %v883 = vld [vmem:[%s2] sm:$0x7]
          %v885 = vlaneseq
          %v886 = vshrl.u32 %v885, 7
          %v887 = vsub.s32 0, %v886
          %v888 = vrot.slane %v883, %v887
          %v889 = vlaneseq
          %v890 = vshrl.u32 %v889, 7
          %v891 = vsub.s32 1, %v890
          %v892 = vrot.slane %v883, %v891
          %v893 = vlaneseq
          %v894 = vshrl.u32 %v893, 7
          %v895 = vsub.s32 2, %v894
          %v896 = vrot.slane %v883, %v895
          %v900 = vadd.f32 %v877, %v888
          %v901 = vadd.f32 %v878, %v892
          %v902 = vadd.f32 %v879, %v896
          %v903 = vadd.f32 %v880, %v888
          %v904 = vadd.f32 %v881, %v892
          %v905 = vadd.f32 %v882, %v896
          %v906 = vmul.f32 %v900, 0.2
          %v907 = vmul.f32 %v901, 0.2
          %v908 = vmul.f32 %v902, 0.2
          %v909 = vmul.f32 %v903, 0.2
          %v910 = vmul.f32 %v904, 0.2
          %v911 = vmul.f32 %v905, 0.2
          %v912 = vmax.f32 %v900, %v906
          %v913 = vmax.f32 %v901, %v907
          %v914 = vmax.f32 %v902, %v908
          %v915 = vmax.f32 %v903, %v909
          %v916 = vmax.f32 %v904, %v910
          %v917 = vmax.f32 %v905, %v911
          %v918 = vpack.c.bf16 %v915, %v912
          %v919 = vpack.c.bf16 %v916, %v913
          %v920 = vpack.c.bf16 %v917, %v914
          %v921 = vld [vmem:[%s3] sm:$0xf]
          %v922 = vld [vmem:[%s3 + $0x4] sm:$0xf]
          %v923 = vld [vmem:[%s3 + $0x8] sm:$0xf]
          %v924 = vld [vmem:[%s3 + $0xc] sm:$0xf]
          %v925 = vld [vmem:[%s3 + $0x10] sm:$0xf]
          %v926 = vld [vmem:[%s3 + $0x14] sm:$0xf]
          %v927 = vld [vmem:[%s3 + $0x18] sm:$0xf]
          %v928 = vld [vmem:[%s3 + $0x1c] sm:$0xf]
          %v929 = vld [vmem:[%s3 + $0x20] sm:$0xf]
          %v930 = vld [vmem:[%s3 + $0x24] sm:$0xf]
          %v931 = vld [vmem:[%s3 + $0x28] sm:$0xf]
          %v932 = vld [vmem:[%s3 + $0x2c] sm:$0xf]
          %v933 = vld [vmem:[%s3 + $0x30] sm:$0xf]
          %v934 = vld [vmem:[%s3 + $0x34] sm:$0xf]
          %v935 = vld [vmem:[%s3 + $0x38] sm:$0xf]
          %v936 = vld [vmem:[%s3 + $0x3c] sm:$0xf]
          %v937 = vld [vmem:[%s3 + $0x40] sm:$0xf]
          %v938 = vld [vmem:[%s3 + $0x44] sm:$0xf]
          %v939 = vld [vmem:[%s3 + $0x48] sm:$0xf]
          %v940 = vld [vmem:[%s3 + $0x4c] sm:$0xf]
          %v941 = vld [vmem:[%s3 + $0x50] sm:$0xf]
          %v942 = vld [vmem:[%s3 + $0x54] sm:$0xf]
          %v943 = vld [vmem:[%s3 + $0x58] sm:$0xf]
          %v944 = vld [vmem:[%s3 + $0x5c] sm:$0xf]
          %v945 = vld [vmem:[%s3 + $0x60] sm:$0xf]
          %v946 = vld [vmem:[%s3 + $0x64] sm:$0xf]
          %v947 = vld [vmem:[%s3 + $0x68] sm:$0xf]
          %v948 = vld [vmem:[%s3 + $0x6c] sm:$0xf]
          %v949 = vld [vmem:[%s3 + $0x70] sm:$0xf]
          %v950 = vld [vmem:[%s3 + $0x74] sm:$0xf]
          %v951 = vld [vmem:[%s3 + $0x78] sm:$0xf]
          %v952 = vld [vmem:[%s3 + $0x7c] sm:$0xf]
          %v953 = vld [vmem:[%s3 + $0x80] sm:$0xf]
          %v954 = vld [vmem:[%s3 + $0x84] sm:$0xf]
          %v955 = vld [vmem:[%s3 + $0x88] sm:$0xf]
          %v956 = vld [vmem:[%s3 + $0x8c] sm:$0xf]
          %v957 = vld [vmem:[%s3 + $0x90] sm:$0xf]
          %v958 = vld [vmem:[%s3 + $0x94] sm:$0xf]
          %v959 = vld [vmem:[%s3 + $0x98] sm:$0xf]
          %v960 = vld [vmem:[%s3 + $0x9c] sm:$0xf]
          %v961 = vld [vmem:[%s3 + $0xa0] sm:$0xf]
          %v962 = vld [vmem:[%s3 + $0xa4] sm:$0xf]
          %v963 = vld [vmem:[%s3 + $0xa8] sm:$0xf]
          %v964 = vld [vmem:[%s3 + $0xac] sm:$0xf]
          %v965 = vld [vmem:[%s3 + $0xb0] sm:$0xf]
          %v966 = vld [vmem:[%s3 + $0xb4] sm:$0xf]
          %v967 = vld [vmem:[%s3 + $0xb8] sm:$0xf]
          %v968 = vld [vmem:[%s3 + $0xbc] sm:$0xf]
          %v969 = vld [vmem:[%s4] sm:$0x1]
          %v971 = vlaneseq
          %v972 = vshrl.u32 %v971, 7
          %v973 = vsub.s32 0, %v972
          %v974 = vrot.slane %v969, %v973
          %v1024 = vunpack.c.l.b16 %v921
          %v1025 = vunpack.c.l.b16 %v922
          %v1026 = vunpack.c.l.b16 %v923
          %v1027 = vunpack.c.l.b16 %v924
          %v1028 = vunpack.c.l.b16 %v925
          %v1029 = vunpack.c.l.b16 %v926
          %v1030 = vunpack.c.l.b16 %v927
          %v1031 = vunpack.c.l.b16 %v928
          %v1032 = vunpack.c.l.b16 %v929
          %v1033 = vunpack.c.l.b16 %v930
          %v1034 = vunpack.c.l.b16 %v931
          %v1035 = vunpack.c.l.b16 %v932
          %v1036 = vunpack.c.l.b16 %v933
          %v1037 = vunpack.c.l.b16 %v934
          %v1038 = vunpack.c.l.b16 %v935
          %v1039 = vunpack.c.l.b16 %v936
          %v1040 = vunpack.c.l.b16 %v937
          %v1041 = vunpack.c.l.b16 %v938
          %v1042 = vunpack.c.l.b16 %v939
          %v1043 = vunpack.c.l.b16 %v940
          %v1044 = vunpack.c.l.b16 %v941
          %v1045 = vunpack.c.l.b16 %v942
          %v1046 = vunpack.c.l.b16 %v943
          %v1047 = vunpack.c.l.b16 %v944
          %v1048 = vunpack.c.l.b16 %v945
          %v1049 = vunpack.c.l.b16 %v946
          %v1050 = vunpack.c.l.b16 %v947
          %v1051 = vunpack.c.l.b16 %v948
          %v1052 = vunpack.c.l.b16 %v949
          %v1053 = vunpack.c.l.b16 %v950
          %v1054 = vunpack.c.l.b16 %v951
          %v1055 = vunpack.c.l.b16 %v952
          %v1056 = vunpack.c.l.b16 %v953
          %v1057 = vunpack.c.l.b16 %v954
          %v1058 = vunpack.c.l.b16 %v955
          %v1059 = vunpack.c.l.b16 %v956
          %v1060 = vunpack.c.l.b16 %v957
          %v1061 = vunpack.c.l.b16 %v958
          %v1062 = vunpack.c.l.b16 %v959
          %v1063 = vunpack.c.l.b16 %v960
          %v1064 = vunpack.c.l.b16 %v961
          %v1065 = vunpack.c.l.b16 %v962
          %v1066 = vunpack.c.l.b16 %v963
          %v1067 = vunpack.c.l.b16 %v964
          %v1068 = vunpack.c.l.b16 %v965
          %v1069 = vunpack.c.l.b16 %v966
          %v1070 = vunpack.c.l.b16 %v967
          %v1071 = vunpack.c.l.b16 %v968
          %v1072 = vpack.c.b16 %v1025, %v1024
          %v1073 = vpack.c.b16 %v1027, %v1026
          %v1074 = vpack.c.b16 %v1029, %v1028
          %v1075 = vpack.c.b16 %v1031, %v1030
          %v1076 = vpack.c.b16 %v1033, %v1032
          %v1077 = vpack.c.b16 %v1035, %v1034
          %v1078 = vpack.c.b16 %v1037, %v1036
          %v1079 = vpack.c.b16 %v1039, %v1038
          %v1080 = vpack.c.b16 %v1041, %v1040
          %v1081 = vpack.c.b16 %v1043, %v1042
          %v1082 = vpack.c.b16 %v1045, %v1044
          %v1083 = vpack.c.b16 %v1047, %v1046
          %v1084 = vpack.c.b16 %v1049, %v1048
          %v1085 = vpack.c.b16 %v1051, %v1050
          %v1086 = vpack.c.b16 %v1053, %v1052
          %v1087 = vpack.c.b16 %v1055, %v1054
          %v1088 = vpack.c.b16 %v1057, %v1056
          %v1089 = vpack.c.b16 %v1059, %v1058
          %v1090 = vpack.c.b16 %v1061, %v1060
          %v1091 = vpack.c.b16 %v1063, %v1062
          %v1092 = vpack.c.b16 %v1065, %v1064
          %v1093 = vpack.c.b16 %v1067, %v1066
          %v1094 = vpack.c.b16 %v1069, %v1068
          %v1095 = vpack.c.b16 %v1071, %v1070
          %1120 = vmatprep.subr.bf16.mxu0 0
          %1121 = vmatpush1.bf16.msra.mxu0 %v1079
          %1122 = vmatprep.subr.bf16.mxu0 0
          %1123 = vmatpush1.bf16.msra.mxu0 %v1078
          %1124 = vmatprep.subr.bf16.mxu0 0
          %1125 = vmatpush1.bf16.msra.mxu0 %v1077
          %1126 = vmatprep.subr.bf16.mxu0 0
          %1127 = vmatpush1.bf16.msra.mxu0 %v1076
          %1128 = vmatprep.subr.bf16.mxu0 0
          %1129 = vmatpush1.bf16.msra.mxu0 %v1075
          %1130 = vmatprep.subr.bf16.mxu0 0
          %1131 = vmatpush1.bf16.msra.mxu0 %v1074
          %1132 = vmatprep.subr.bf16.mxu0 0
          %1133 = vmatpush1.bf16.msra.mxu0 %v1073
          %1134 = vmatprep.subr.bf16.mxu0 0
          %1135 = vmatpush1.bf16.msra.mxu0 %v1072
          %1136 = vmatprep.subr.bf16.mxu0 0
          %1137 = vmatpush2.bf16.msra.mxu0 %v1087
          %1138 = vmatprep.subr.bf16.mxu0 0
          %1139 = vmatpush2.bf16.msra.mxu0 %v1086
          %1140 = vmatprep.subr.bf16.mxu0 0
          %1141 = vmatpush2.bf16.msra.mxu0 %v1085
          %1142 = vmatprep.subr.bf16.mxu0 0
          %1143 = vmatpush2.bf16.msra.mxu0 %v1084
          %1144 = vmatprep.subr.bf16.mxu0 0
          %1145 = vmatpush2.bf16.msra.mxu0 %v1083
          %1146 = vmatprep.subr.bf16.mxu0 0
          %1147 = vmatpush2.bf16.msra.mxu0 %v1082
          %1148 = vmatprep.subr.bf16.mxu0 0
          %1149 = vmatpush2.bf16.msra.mxu0 %v1081
          %1150 = vmatprep.subr.bf16.mxu0 0
          %1151 = vmatpush2.bf16.msra.mxu0 %v1080
          %1152 = vmatprep.mubr.bf16.mxu0 %v919
          %1153 = vmatmul.mubr.bf16.gmra.mxu0 %v918
          %v1154 = vpop.f32.mrf.mxu0
          %v1155 = vadd.f32 %v974, %v1154
          %v1156 = vpop.f32.mrf.mxu0
          %v1157 = vpop.f32.mrf.mxu0
          %v1158 = vadd.f32 %v974, %v1157
          %v1159 = vpop.f32.mrf.mxu0
          %1160 = vdwg.mxu0
          %1161 = vmatprep.subr.bf16.mxu0 0
          %1162 = vmatpush1.bf16.msra.mxu0 %v1095
          %1163 = vmatprep.subr.bf16.mxu0 0
          %1164 = vmatpush1.bf16.msra.mxu0 %v1094
          %1165 = vmatprep.subr.bf16.mxu0 0
          %1166 = vmatpush1.bf16.msra.mxu0 %v1093
          %1167 = vmatprep.subr.bf16.mxu0 0
          %1168 = vmatpush1.bf16.msra.mxu0 %v1092
          %1169 = vmatprep.subr.bf16.mxu0 0
          %1170 = vmatpush1.bf16.msra.mxu0 %v1091
          %1171 = vmatprep.subr.bf16.mxu0 0
          %1172 = vmatpush1.bf16.msra.mxu0 %v1090
          %1173 = vmatprep.subr.bf16.mxu0 0
          %1174 = vmatpush1.bf16.msra.mxu0 %v1089
          %1175 = vmatprep.subr.bf16.mxu0 0
          %1176 = vmatpush1.bf16.msra.mxu0 %v1088
          %1177 = vmatprep.subr.bf16.mxu0 0
          %1178 = vmatpush2.bf16.msra.mxu0 0
          %1179 = vmatprep.subr.bf16.mxu0 0
          %1180 = vmatpush2.bf16.msra.mxu0 0
          %1181 = vmatprep.subr.bf16.mxu0 0
          %1182 = vmatpush2.bf16.msra.mxu0 0
          %1183 = vmatprep.subr.bf16.mxu0 0
          %1184 = vmatpush2.bf16.msra.mxu0 0
          %1185 = vmatprep.subr.bf16.mxu0 0
          %1186 = vmatpush2.bf16.msra.mxu0 0
          %1187 = vmatprep.subr.bf16.mxu0 0
          %1188 = vmatpush2.bf16.msra.mxu0 0
          %1189 = vmatprep.subr.bf16.mxu0 0
          %1190 = vmatpush2.bf16.msra.mxu0 0
          %1191 = vmatprep.subr.bf16.mxu0 0
          %1192 = vmatpush2.bf16.msra.mxu0 0
          %1193 = vmatprep.mubr.bf16.mxu0 0
          %1194 = vmatmul.mubr.bf16.gmra.mxu0 %v920
          %v1195 = vpop.f32.mrf.mxu0
          %v1196 = vadd.f32 %v1155, %v1195
          %v1197 = vpop.f32.mrf.mxu0
          %v1198 = vpop.f32.mrf.mxu0
          %v1199 = vadd.f32 %v1158, %v1198
          %v1200 = vpop.f32.mrf.mxu0
          %1201 = vdwg.mxu0
          %v1202 = vmul.f32 %v1196, 0.2
          %v1203 = vmul.f32 %v1199, 0.2
          %v1204 = vmax.f32 %v1196, %v1202
          %v1205 = vmax.f32 %v1199, %v1203
          %v1206 = vpack.c.bf16 %v1205, %v1204
          %v1207 = vld [vmem:[%s5] sm:$0xf]
          %v1208 = vld [vmem:[%s5 + $0x4] sm:$0xf]
          %v1209 = vld [vmem:[%s5 + $0x8] sm:$0xf]
          %v1210 = vld [vmem:[%s5 + $0xc] sm:$0xf]
          %v1211 = vld [vmem:[%s5 + $0x10] sm:$0xf]
          %v1212 = vld [vmem:[%s5 + $0x14] sm:$0xf]
          %v1213 = vld [vmem:[%s5 + $0x18] sm:$0xf]
          %v1214 = vld [vmem:[%s5 + $0x1c] sm:$0xf]
          %v1215 = vld [vmem:[%s5 + $0x20] sm:$0xf]
          %v1216 = vld [vmem:[%s5 + $0x24] sm:$0xf]
          %v1217 = vld [vmem:[%s5 + $0x28] sm:$0xf]
          %v1218 = vld [vmem:[%s5 + $0x2c] sm:$0xf]
          %v1219 = vld [vmem:[%s6] sm:$0x1]
          %v1221 = vlaneseq
          %v1222 = vshrl.u32 %v1221, 7
          %v1223 = vsub.s32 0, %v1222
          %v1224 = vrot.slane %v1219, %v1223
          %v1238 = vunpack.c.l.b16 %v1207
          %v1239 = vunpack.c.l.b16 %v1208
          %v1240 = vunpack.c.l.b16 %v1209
          %v1241 = vunpack.c.l.b16 %v1210
          %v1242 = vunpack.c.l.b16 %v1211
          %v1243 = vunpack.c.l.b16 %v1212
          %v1244 = vunpack.c.l.b16 %v1213
          %v1245 = vunpack.c.l.b16 %v1214
          %v1246 = vunpack.c.l.b16 %v1215
          %v1247 = vunpack.c.l.b16 %v1216
          %v1248 = vunpack.c.l.b16 %v1217
          %v1249 = vunpack.c.l.b16 %v1218
          %v1250 = vpack.c.b16 %v1239, %v1238
          %v1251 = vpack.c.b16 %v1241, %v1240
          %v1252 = vpack.c.b16 %v1243, %v1242
          %v1253 = vpack.c.b16 %v1245, %v1244
          %v1254 = vpack.c.b16 %v1247, %v1246
          %v1255 = vpack.c.b16 %v1249, %v1248
          %vm1262 = vcmask 785408
          %v1264 = vsel %vm1262, %v1206, 0
          %1266 = vmatprep.subr.bf16.mxu0 0
          %1267 = vmatpush1.bf16.msra.mxu0 0
          %1268 = vmatprep.subr.bf16.mxu0 0
          %1269 = vmatpush1.bf16.msra.mxu0 0
          %1270 = vmatprep.subr.bf16.mxu0 0
          %1271 = vmatpush1.bf16.msra.mxu0 %v1255
          %1272 = vmatprep.subr.bf16.mxu0 0
          %1273 = vmatpush1.bf16.msra.mxu0 %v1254
          %1274 = vmatprep.subr.bf16.mxu0 0
          %1275 = vmatpush1.bf16.msra.mxu0 %v1253
          %1276 = vmatprep.subr.bf16.mxu0 0
          %1277 = vmatpush1.bf16.msra.mxu0 %v1252
          %1278 = vmatprep.subr.bf16.mxu0 0
          %1279 = vmatpush1.bf16.msra.mxu0 %v1251
          %1280 = vmatprep.subr.bf16.mxu0 0
          %1281 = vmatpush1.bf16.msra.mxu0 %v1250
          %1282 = vmatprep.subr.bf16.mxu0 0
          %1283 = vmatpush2.bf16.msra.mxu0 0
          %1284 = vmatprep.subr.bf16.mxu0 0
          %1285 = vmatpush2.bf16.msra.mxu0 0
          %1286 = vmatprep.subr.bf16.mxu0 0
          %1287 = vmatpush2.bf16.msra.mxu0 0
          %1288 = vmatprep.subr.bf16.mxu0 0
          %1289 = vmatpush2.bf16.msra.mxu0 0
          %1290 = vmatprep.subr.bf16.mxu0 0
          %1291 = vmatpush2.bf16.msra.mxu0 0
          %1292 = vmatprep.subr.bf16.mxu0 0
          %1293 = vmatpush2.bf16.msra.mxu0 0
          %1294 = vmatprep.subr.bf16.mxu0 0
          %1295 = vmatpush2.bf16.msra.mxu0 0
          %1296 = vmatprep.subr.bf16.mxu0 0
          %1297 = vmatpush2.bf16.msra.mxu0 0
          %1298 = vmatprep.mubr.bf16.mxu0 0
          %1299 = vmatmul.mubr.bf16.gmra.mxu0 %v1264
          %v1300 = vpop.f32.mrf.mxu0
          %v1301 = vadd.f32 %v1224, %v1300
          %v1302 = vpop.f32.mrf.mxu0
          %v1303 = vpop.f32.mrf.mxu0
          %v1304 = vadd.f32 %v1224, %v1303
          %v1305 = vpop.f32.mrf.mxu0
          %1306 = vdwg.mxu0
          %v1307 = vmul.f32 %v1301, 0.2
          %v1308 = vmul.f32 %v1304, 0.2
          %v1309 = vmax.f32 %v1301, %v1307
          %v1310 = vmax.f32 %v1304, %v1308
          %v1311 = vld [vmem:[%s7] sm:$0x1]
          %v1312 = vunpack.c.l.bf16 %v1311
          %v1313 = vlaneseq
          %v1314 = vshrl.u32 %v1313, 7
          %v1315 = vsub.s32 0, %v1314
          %v1316 = vrot.slane %v1312, %v1315
          %v1317 = vmul.f32 %v1309, %v1316
          %v1318 = vmul.f32 %v1310, %v1316
          %vm1319 = vcmask 261120
          %v1320 = vsel %vm1319, %v1317, 0.0
          %1321 = vadd.xlane.f32.xlu0 %v1320
          %v1322 = vpop.xlane.xlu0 %1321
          %v1323 = vsel %vm1319, %v1318, 0.0
          %1324 = vadd.xlane.f32.xlu0 %v1323
          %v1325 = vpop.xlane.xlu0 %1324
          %v1326 = vld [vmem:[#allocation3] sm:$0x1]
          %v1328 = vlaneseq
          %v1329 = vshrl.u32 %v1328, 7
          %v1330 = vsub.s32 0, %v1329
          %v1331 = vrot.slane %v1326, %v1330
          %v1333 = vadd.f32 %v1322, %v1331
          %v1334 = vadd.f32 %v1325, %v1331
          %1336 = vset.pattern.permute.xlu0 0
          %1337 = vperm.xlu0 %1336, %v1333
          %v1338 = vpop.permute.xlu0 %1337
          %1341 = vset.pattern.permute.xlu0 0
          %1342 = vperm.xlu0 %1341, %v1334
          %v1343 = vpop.permute.xlu0 %1342
          %1345 = vst [vmem:[#allocation8] sm:$0xff] %v1338
          %1346 = vst [vmem:[#allocation8 + $0x8] sm:$0xff] %v1343
        $region106: #{tpu_custom_call.1} parent=89 // pred_fallthru
          _
        // Predicated region
        $region107: #{tpu_custom_call.1} parent=89 // pred_check
          %p1347 = pneg %p257
        $region108: #{tpu_custom_call.1} parent=89 // pred_check_branch
          %1349 = sbr.rel (%p1347) target = $region110
        $region109: #{tpu_custom_call.1} parent=89 // pred_region
          %s1350 = smul.u32 2, %s30
          %s1352 = ssub.s32 256, 256
          %1353 = vsyncadd [#allocation7], %s1352
          %s1354 = smul.addr %s1350, 128
          %s1355 = scalar_lea.hbm %s9, %s1354
          %s1356 = sshll.u32 [#allocation8], 4
          %s1357 = int_to_ptr.vmem [resolvable:$true] %s1356
          %1362 = dma.vmem_to_hbm [thread:$0]  %s1357, 256, %s1355, [#allocation7], 128, 128, 8
        $region110: #{tpu_custom_call.1} parent=89 // pred_fallthru
          _
        // Predicated region
        $region111: #{tpu_custom_call.1} parent=89 // pred_check
          %p1363 = pneg %p257
        $region112: #{tpu_custom_call.1} parent=89 // pred_check_branch
          %1365 = sbr.rel (%p1363) target = $region114
        $region113: #{tpu_custom_call.1} parent=89 // pred_region
          %1366 = dma.done [#allocation7], 256
        $region114: #{tpu_custom_call.1} parent=89 // pred_fallthru
          _
      $region90: #{tpu_custom_call.1} parent=5 // pred_fallthru
        _
      %p1367 = scmp.le.s32.totalorder 2, %s21
      // Predicated region
      $region115: #{tpu_custom_call.1} parent=5 // pred_check
        %p1368 = pneg %p1367
      $region116: #{tpu_custom_call.1} parent=5 // pred_check_branch
        %1370 = sbr.rel (%p1368) target = $region118
      $region117: #{tpu_custom_call.1} parent=5 // pred_region
        %s1371 = ssub.s32 %s21, 2
      $region118: #{tpu_custom_call.1} parent=5 // pred_fallthru
        _
    $region6: #{tpu_custom_call.1} parent=1 // loop_footer
      %s25 = sadd.s32 1, %s21
    $region7: #{tpu_custom_call.1} parent=1 // loop_footer_branch
      %20 = sbr.rel target = $region3
    $region8: #{tpu_custom_call.1} parent=1 // loop_exit
      _
    %1372 = vsyncpa [#allocation6], 1
    %s1373 = scalar_lea.sflag [#allocation6], 1
    %1374 = vsyncpa %s1373, 1
    %1375 = vsyncpa [#allocation7], 1
    %s1376 = scalar_lea.sflag [#allocation7], 1
    %1377 = vsyncpa %s1376, 1

</llo_original>
